<compile_context>
chip_gen: v7x
topology: tpu7x:2x2x1
jax: 0.10.0
libtpu: 0.0.40
codegen_flags: <defaults>
</compile_context>

<pallas_src>
import functools

import jax
import jax.numpy as jnp
from jax.experimental import pallas as pl
from jax.experimental.pallas import tpu as pltpu

_LANE = 128
_SUBLANE = 8


def _round_up(x, m):
    return (x + m - 1) // m * m


# ---------------------------------------------------------------------------
# Fused forward kernel (whole problem resident in VMEM; single invocation)
# ---------------------------------------------------------------------------

def _gcn_fused_kernel(a_ref, h_ref, w_in_ref, b_in_ref, wc_ref, bc_ref,
                      w_out_ref, b_out_ref, o_ref, h_buf,
                      *, num_layers, nclass):
    """Fused GCN forward.

    a_ref   : [Np, Np]    bf16  symmetric-normalized adjacency (VMEM-resident)
    h_ref   : [Np, Fi]    f32   input node features (lane-padded)
    w_in    : [Fi, Fh]    f32   in_fc weight (lane-padded)
    b_in    : [1,  Fh]    f32
    wc_ref  : [L, Fh, Fh] f32   stacked GraphConv weights
    bc_ref  : [L, 1,  Fh] f32   stacked GraphConv biases
    w_out   : [Fh, Fo]    f32   out_fc weight (lane-padded)
    b_out   : [1,  Fo]    f32
    o_ref   : [Np, Fo]    f32   lane-dense log-probs (padded classes garbage)
    h_buf   : [Np, Fh]    f32   VMEM scratch holding h between layers
    """
    # A_hat stays bf16 (no f32 VMEM copy); MXU consumes bf16 x bf16 -> f32 acc.
    a = a_ref[...]

    # ---- in_fc + relu -----------------------------------------------------
    h = jnp.dot(h_ref[...], w_in_ref[...], preferred_element_type=jnp.float32)
    h_buf[...] = jnp.maximum(h + b_in_ref[...], 0.0)

    # ---- convs[0]: relu(A @ (h @ W0) + b0) --------------------------------
    xw = jnp.dot(h_buf[...], wc_ref[0], preferred_element_type=jnp.float32)
    h = jnp.dot(a, xw.astype(jnp.bfloat16),
                preferred_element_type=jnp.float32) + bc_ref[0]
    h_buf[...] = jnp.maximum(h, 0.0)

    # ---- convs[1..L-1]: A @ (h @ Wi) + bi  (no activation in the loop) ----
    for i in range(1, num_layers):
        xw = jnp.dot(h_buf[...], wc_ref[i], preferred_element_type=jnp.float32)
        h_buf[...] = jnp.dot(a, xw.astype(jnp.bfloat16),
                             preferred_element_type=jnp.float32) + bc_ref[i]

    # ---- out_fc + log_softmax epilogue -------------------------------------
    logits = jnp.dot(h_buf[...], w_out_ref[...],
                     preferred_element_type=jnp.float32) + b_out_ref[...]
    lane = jax.lax.broadcasted_iota(jnp.int32, logits.shape, 1)
    logits = jnp.where(lane < nclass, logits, jnp.float32(-1e30))
    m = jnp.max(logits, axis=1, keepdims=True)
    s = logits - m
    lse = jnp.log(jnp.sum(jnp.exp(s), axis=1, keepdims=True))
    o_ref[...] = (s - lse).astype(o_ref.dtype)


# ---------------------------------------------------------------------------
# Wrapper: pad to TPU-friendly shapes and call the fused kernel once
# ---------------------------------------------------------------------------

def _pad2(x, rows, cols):
    return jnp.zeros((rows, cols), x.dtype).at[:x.shape[0], :x.shape[1]].set(x)


def gcn_forward(params, a_hat, h, num_layers):
    n, nfeat = h.shape
    nhid = params["in_fc"][0].shape[1]
    nclass = params["out_fc"][0].shape[1]

    n_p = _round_up(n, _SUBLANE)
    fi_p = _round_up(nfeat, _LANE)
    fh_p = _round_up(nhid, _LANE)
    fo_p = _round_up(nclass, _LANE)

    # Lane-padded, f32 parameters (zeros in padded rows/cols keep semantics;
    # zero-padded A columns keep padded-row garbage out of real rows).
    w_in, b_in = params["in_fc"]
    w_in_p = _pad2(w_in, fi_p, fh_p)
    b_in_p = _pad2(b_in.reshape(1, -1), 1, fh_p)

    wc_p = jnp.stack([_pad2(w, fh_p, fh_p) for (w, _) in params["convs"]])
    bc_p = jnp.stack([_pad2(b.reshape(1, -1), 1, fh_p)
                      for (_, b) in params["convs"]])

    w_out, b_out = params["out_fc"]
    w_out_p = _pad2(w_out, fh_p, fo_p)
    b_out_p = _pad2(b_out.reshape(1, -1), 1, fo_p)

    # A_hat in bf16 (halves the O(N^2) HBM/VMEM bytes); features in f32.
    a_p = _pad2(a_hat.astype(jnp.bfloat16), n_p, n_p)
    h_p = _pad2(h.astype(jnp.float32), n_p, fi_p)

    # VMEM budget: actual working set (x2 margin) clamped to a safe window
    # (48 MiB stays under v7x's 64 MiB physical VMEM).
    in_bytes = (a_p.size * 2 + h_p.size * 4 + w_in_p.size * 4 + b_in_p.size * 4
                + wc_p.size * 4 + bc_p.size * 4 + w_out_p.size * 4
                + b_out_p.size * 4)
    work_bytes = in_bytes + n_p * fo_p * 4 + n_p * fh_p * 4
    vmem_limit = int(min(48 << 20, max(32 << 20, 2 * work_bytes + (4 << 20))))

    vmem = pl.BlockSpec(memory_space=pltpu.MemorySpace.VMEM)
    kernel = functools.partial(_gcn_fused_kernel,
                               num_layers=num_layers, nclass=nclass)

    out_p = pl.pallas_call(
        kernel,
        out_shape=jax.ShapeDtypeStruct((n_p, fo_p), jnp.float32),
        in_specs=[vmem] * 8,
        out_specs=vmem,
        scratch_shapes=[pltpu.VMEM((n_p, fh_p), jnp.float32)],
        compiler_params=pltpu.CompilerParams(vmem_limit_bytes=vmem_limit),
    )(a_p, h_p, w_in_p, b_in_p, wc_p, bc_p, w_out_p, b_out_p)

    return out_p[:n, :nclass]


# ---------------------------------------------------------------------------
# Pure-JAX reference (same bf16-rounded A_hat input) for correctness validation
# ---------------------------------------------------------------------------

def gcn_reference(params, a_hat, h, num_layers):
    hp = jax.lax.Precision.HIGHEST
    a = a_hat.astype(jnp.bfloat16).astype(jnp.float32)
    w, b = params["in_fc"]
    h = jnp.maximum(jnp.dot(h, w, precision=hp) + b, 0.0)
    w, b = params["convs"][0]
    h = jnp.maximum(jnp.dot(a, jnp.dot(h, w, precision=hp), precision=hp) + b, 0.0)
    for i in range(1, num_layers):
        w, b = params["convs"][i]
        h = jnp.dot(a, jnp.dot(h, w, precision=hp), precision=hp) + b
    w, b = params["out_fc"]
    logits = jnp.dot(h, w, precision=hp) + b
    return jax.nn.log_softmax(logits, axis=1)


# ---------------------------------------------------------------------------
# Parameter construction (deterministic; PyTorch-Linear-style uniform init)
# ---------------------------------------------------------------------------

def _linear_params(key, fan_in, fan_out):
    kw, kb = jax.random.split(key)
    bound = 1.0 / jnp.sqrt(jnp.float32(fan_in))
    w = jax.random.uniform(kw, (fan_in, fan_out), jnp.float32, -bound, bound)
    b = jax.random.uniform(kb, (fan_out,), jnp.float32, -bound, bound)
    return w, b


def init_gcn_params(key, nfeat, nhid, nclass, num_layers):
    keys = jax.random.split(key, num_layers + 2)
    params = {}
    params["in_fc"] = _linear_params(keys[0], nfeat, nhid)
    params["convs"] = [_linear_params(keys[1 + i], nhid, nhid)
                       for i in range(num_layers)]
    params["out_fc"] = _linear_params(keys[num_layers + 1], nhid, nclass)
    return params


def build_normalized_adjacency(key, num_nodes, p_edge=0.15):
    """Dense symmetric adjacency with self-loops, GCN-normalized."""
    a = (jax.random.uniform(key, (num_nodes, num_nodes)) < p_edge).astype(jnp.float32)
    a = jnp.maximum(a, a.T)                        # symmetric
    a = a + jnp.eye(num_nodes, dtype=jnp.float32)  # self loops
    d = jnp.sum(a, axis=1)
    d_inv_sqrt = 1.0 / jnp.sqrt(d)
    return a * d_inv_sqrt[:, None] * d_inv_sqrt[None, :]


if __name__ == "__main__":
    N_NODES = 64
    NFEAT, NHID, NCLASS = 16, 32, 8
    NUM_LAYERS = 2

    key = jax.random.PRNGKey(0)
    k_graph, k_feat, k_param = jax.random.split(key, 3)

    a_hat = build_normalized_adjacency(k_graph, N_NODES)
    h = jax.random.normal(k_feat, (N_NODES, NFEAT), jnp.float32)
    params = init_gcn_params(k_param, NFEAT, NHID, NCLASS, NUM_LAYERS)

    out = gcn_forward(params, a_hat, h, NUM_LAYERS)
    out = jax.block_until_ready(out)

    assert out.shape == (N_NODES, NCLASS)
    # sanity: rows of log_softmax exponentiate and sum to 1
    row_sums = jnp.sum(jnp.exp(out), axis=1)
    assert bool(jnp.all(jnp.abs(row_sums - 1.0) < 1e-4))
    # validate against pure-JAX reference (kernel additionally rounds the per-layer
    # X@W intermediate to bf16 before the MXU, hence the 2e-2 tolerance)
    ref = gcn_reference(params, a_hat, h, NUM_LAYERS)
    max_err = float(jnp.max(jnp.abs(out - ref)))
    assert max_err < 2e-2, max_err

    print("KERNEL_OK")
</pallas_src>

<mosaic_0001>
module attributes {stable_mosaic.version = 11 : i64} {
  func.func @_gcn_fused_kernel(%arg0: memref<64x64xbf16, #tpu.memory_space<vmem>>, %arg1: memref<64x128xf32, #tpu.memory_space<vmem>>, %arg2: memref<128x128xf32, #tpu.memory_space<vmem>>, %arg3: memref<1x128xf32, #tpu.memory_space<vmem>>, %arg4: memref<2x128x128xf32, #tpu.memory_space<vmem>>, %arg5: memref<2x1x128xf32, #tpu.memory_space<vmem>>, %arg6: memref<128x128xf32, #tpu.memory_space<vmem>>, %arg7: memref<1x128xf32, #tpu.memory_space<vmem>>, %arg8: memref<64x128xf32, #tpu.memory_space<vmem>>, %arg9: memref<64x128xf32, #tpu.memory_space<vmem>>) attributes {dimension_semantics = [], scalar_prefetch = 0 : i64, scratch_operands = 1 : i64, tpu.core_type = #tpu.core_type<tc>} {
    %c0 = arith.constant 0 : index
    %c0_0 = arith.constant 0 : index
    %0 = vector.load %arg0[%c0, %c0_0] : memref<64x64xbf16, #tpu.memory_space<vmem>>, vector<64x64xbf16>
    %c0_1 = arith.constant 0 : index
    %c0_2 = arith.constant 0 : index
    %1 = vector.load %arg1[%c0_1, %c0_2] : memref<64x128xf32, #tpu.memory_space<vmem>>, vector<64x128xf32>
    %c0_3 = arith.constant 0 : index
    %c0_4 = arith.constant 0 : index
    %2 = vector.load %arg2[%c0_3, %c0_4] : memref<128x128xf32, #tpu.memory_space<vmem>>, vector<128x128xf32>
    %cst = arith.constant dense<0.000000e+00> : vector<64x128xf32>
    %3 = tpu.matmul %1, %2, %cst {dimension_numbers = #tpu.dot_dimension_numbers<[1], [0], [0], [1], [0, 0, 1, 1], [], []>} : vector<64x128xf32>, vector<128x128xf32>, vector<64x128xf32> -> vector<64x128xf32>
    %c0_5 = arith.constant 0 : index
    %c0_6 = arith.constant 0 : index
    %4 = vector.load %arg3[%c0_5, %c0_6] : memref<1x128xf32, #tpu.memory_space<vmem>>, vector<1x128xf32>
    %5 = vector.broadcast %4 : vector<1x128xf32> to vector<64x128xf32>
    %6 = arith.addf %3, %5 : vector<64x128xf32>
    %cst_7 = arith.constant 0.000000e+00 : f32
    %7 = vector.broadcast %cst_7 : f32 to vector<64x128xf32>
    %8 = arith.maximumf %6, %7 : vector<64x128xf32>
    %c0_8 = arith.constant 0 : index
    %c0_9 = arith.constant 0 : index
    %9 = vector.load %arg9[%c0_8, %c0_9] : memref<64x128xf32, #tpu.memory_space<vmem>>, vector<64x128xf32>
    tpu.vector_store %arg9[%c0_8, %c0_9], %8 {strides = array<i32>} : memref<64x128xf32, #tpu.memory_space<vmem>>, vector<64x128xf32>,
    %c0_10 = arith.constant 0 : index
    %c0_11 = arith.constant 0 : index
    %10 = vector.load %arg9[%c0_10, %c0_11] : memref<64x128xf32, #tpu.memory_space<vmem>>, vector<64x128xf32>
    %c0_12 = arith.constant 0 : index
    %c0_13 = arith.constant 0 : index
    %c0_14 = arith.constant 0 : index
    %11 = vector.load %arg4[%c0_12, %c0_13, %c0_14] : memref<2x128x128xf32, #tpu.memory_space<vmem>>, vector<1x128x128xf32>
    %12 = vector.shape_cast %11 : vector<1x128x128xf32> to vector<128x128xf32>
    %cst_15 = arith.constant dense<0.000000e+00> : vector<64x128xf32>
    %13 = tpu.matmul %10, %12, %cst_15 {dimension_numbers = #tpu.dot_dimension_numbers<[1], [0], [0], [1], [0, 0, 1, 1], [], []>} : vector<64x128xf32>, vector<128x128xf32>, vector<64x128xf32> -> vector<64x128xf32>
    %14 = arith.truncf %13 : vector<64x128xf32> to vector<64x128xbf16>
    %cst_16 = arith.constant dense<0.000000e+00> : vector<64x128xf32>
    %15 = tpu.matmul %0, %14, %cst_16 {dimension_numbers = #tpu.dot_dimension_numbers<[1], [0], [0], [1], [0, 0, 1, 1], [], []>} : vector<64x64xbf16>, vector<64x128xbf16>, vector<64x128xf32> -> vector<64x128xf32>
    %c0_17 = arith.constant 0 : index
    %c0_18 = arith.constant 0 : index
    %c0_19 = arith.constant 0 : index
    %16 = vector.load %arg5[%c0_17, %c0_18, %c0_19] : memref<2x1x128xf32, #tpu.memory_space<vmem>>, vector<1x1x128xf32>
    %17 = vector.shape_cast %16 : vector<1x1x128xf32> to vector<1x128xf32>
    %18 = vector.broadcast %17 : vector<1x128xf32> to vector<64x128xf32>
    %19 = arith.addf %15, %18 : vector<64x128xf32>
    %cst_20 = arith.constant 0.000000e+00 : f32
    %20 = vector.broadcast %cst_20 : f32 to vector<64x128xf32>
    %21 = arith.maximumf %19, %20 : vector<64x128xf32>
    %c0_21 = arith.constant 0 : index
    %c0_22 = arith.constant 0 : index
    %22 = vector.load %arg9[%c0_21, %c0_22] : memref<64x128xf32, #tpu.memory_space<vmem>>, vector<64x128xf32>
    tpu.vector_store %arg9[%c0_21, %c0_22], %21 {strides = array<i32>} : memref<64x128xf32, #tpu.memory_space<vmem>>, vector<64x128xf32>,
    %c0_23 = arith.constant 0 : index
    %c0_24 = arith.constant 0 : index
    %23 = vector.load %arg9[%c0_23, %c0_24] : memref<64x128xf32, #tpu.memory_space<vmem>>, vector<64x128xf32>
    %c1 = arith.constant 1 : index
    %c0_25 = arith.constant 0 : index
    %c0_26 = arith.constant 0 : index
    %24 = vector.load %arg4[%c1, %c0_25, %c0_26] : memref<2x128x128xf32, #tpu.memory_space<vmem>>, vector<1x128x128xf32>
    %25 = vector.shape_cast %24 : vector<1x128x128xf32> to vector<128x128xf32>
    %cst_27 = arith.constant dense<0.000000e+00> : vector<64x128xf32>
    %26 = tpu.matmul %23, %25, %cst_27 {dimension_numbers = #tpu.dot_dimension_numbers<[1], [0], [0], [1], [0, 0, 1, 1], [], []>} : vector<64x128xf32>, vector<128x128xf32>, vector<64x128xf32> -> vector<64x128xf32>
    %27 = arith.truncf %26 : vector<64x128xf32> to vector<64x128xbf16>
    %cst_28 = arith.constant dense<0.000000e+00> : vector<64x128xf32>
    %28 = tpu.matmul %0, %27, %cst_28 {dimension_numbers = #tpu.dot_dimension_numbers<[1], [0], [0], [1], [0, 0, 1, 1], [], []>} : vector<64x64xbf16>, vector<64x128xbf16>, vector<64x128xf32> -> vector<64x128xf32>
    %c1_29 = arith.constant 1 : index
    %c0_30 = arith.constant 0 : index
    %c0_31 = arith.constant 0 : index
    %29 = vector.load %arg5[%c1_29, %c0_30, %c0_31] : memref<2x1x128xf32, #tpu.memory_space<vmem>>, vector<1x1x128xf32>
    %30 = vector.shape_cast %29 : vector<1x1x128xf32> to vector<1x128xf32>
    %31 = vector.broadcast %30 : vector<1x128xf32> to vector<64x128xf32>
    %32 = arith.addf %28, %31 : vector<64x128xf32>
    %c0_32 = arith.constant 0 : index
    %c0_33 = arith.constant 0 : index
    %33 = vector.load %arg9[%c0_32, %c0_33] : memref<64x128xf32, #tpu.memory_space<vmem>>, vector<64x128xf32>
    tpu.vector_store %arg9[%c0_32, %c0_33], %32 {strides = array<i32>} : memref<64x128xf32, #tpu.memory_space<vmem>>, vector<64x128xf32>,
    %c0_34 = arith.constant 0 : index
    %c0_35 = arith.constant 0 : index
    %34 = vector.load %arg9[%c0_34, %c0_35] : memref<64x128xf32, #tpu.memory_space<vmem>>, vector<64x128xf32>
    %c0_36 = arith.constant 0 : index
    %c0_37 = arith.constant 0 : index
    %35 = vector.load %arg6[%c0_36, %c0_37] : memref<128x128xf32, #tpu.memory_space<vmem>>, vector<128x128xf32>
    %cst_38 = arith.constant dense<0.000000e+00> : vector<64x128xf32>
    %36 = tpu.matmul %34, %35, %cst_38 {dimension_numbers = #tpu.dot_dimension_numbers<[1], [0], [0], [1], [0, 0, 1, 1], [], []>} : vector<64x128xf32>, vector<128x128xf32>, vector<64x128xf32> -> vector<64x128xf32>
    %c0_39 = arith.constant 0 : index
    %c0_40 = arith.constant 0 : index
    %37 = vector.load %arg7[%c0_39, %c0_40] : memref<1x128xf32, #tpu.memory_space<vmem>>, vector<1x128xf32>
    %38 = vector.broadcast %37 : vector<1x128xf32> to vector<64x128xf32>
    %39 = arith.addf %36, %38 : vector<64x128xf32>
    %40 = tpu.iota {dimensions = array<i32: 1>} : vector<64x128xi32>
    %c8_i32 = arith.constant 8 : i32
    %41 = vector.broadcast %c8_i32 : i32 to vector<64x128xi32>
    %42 = arith.cmpi slt, %40, %41 : vector<64x128xi32>
    %cst_41 = arith.constant -1.000000e+30 : f32
    %43 = vector.broadcast %cst_41 : f32 to vector<64x128xf32>
    %44 = arith.select %42, %39, %43 : vector<64x128xi1>, vector<64x128xf32>
    %cst_42 = arith.constant dense<0xFF800000> : vector<64xf32>
    %45 = vector.multi_reduction <maximumf>, %44, %cst_42 [1] : vector<64x128xf32> to vector<64xf32>
    %46 = vector.shape_cast %45 : vector<64xf32> to vector<64x1xf32>
    %47 = vector.broadcast %46 : vector<64x1xf32> to vector<64x128xf32>
    %48 = arith.subf %44, %47 : vector<64x128xf32>
    %49 = math.exp %48 : vector<64x128xf32>
    %cst_43 = arith.constant dense<0.000000e+00> : vector<64xf32>
    %50 = vector.multi_reduction <add>, %49, %cst_43 [1] : vector<64x128xf32> to vector<64xf32>
    %51 = vector.shape_cast %50 : vector<64xf32> to vector<64x1xf32>
    %52 = math.log %51 : vector<64x1xf32>
    %53 = vector.broadcast %52 : vector<64x1xf32> to vector<64x128xf32>
    %54 = arith.subf %48, %53 : vector<64x128xf32>
    %c0_44 = arith.constant 0 : index
    %c0_45 = arith.constant 0 : index
    %55 = vector.load %arg8[%c0_44, %c0_45] : memref<64x128xf32, #tpu.memory_space<vmem>>, vector<64x128xf32>
    tpu.vector_store %arg8[%c0_44, %c0_45], %54 {strides = array<i32>} : memref<64x128xf32, #tpu.memory_space<vmem>>, vector<64x128xf32>,
    return
  }
}

</mosaic_0001>

<llo_original>
// kernel: tpu_custom_call.1
$region0: #{tpu_custom_call.1}
  #allocation0 [shape = 'u32[]', space=smem, size = 0x4, offset = 0x4, fixed_abs, tag = 'smem constant byte address 0x4 - core index']
  #allocation1 [shape = 'u32[144,128]{1,0:T(1,128)}', space=vmem, size = 0x12000, scoped, tag = 'internal scratch']
  #allocation2 [shape = 'f32[64,128]{1,0:T(8,128)}', space=vmem, size = 0x8000, scoped, tag = 'scratch operand']
  %s0 = inlined_call_operand.hbm [shape: bf16[64,64], index: 0, kind: input, shape index: {}]
  %s1 = inlined_call_operand.hbm [shape: f32[64,128], index: 1, kind: input, shape index: {}]
  %s2 = inlined_call_operand.hbm [shape: f32[128,128], index: 2, kind: input, shape index: {}]
  %s3 = inlined_call_operand.vmem [shape: f32[1,128], index: 3, kind: input, shape index: {}]
  %s4 = inlined_call_operand.hbm [shape: f32[2,128,128], index: 4, kind: input, shape index: {}]
  %s5 = inlined_call_operand.vmem [shape: f32[2,1,128], index: 5, kind: input, shape index: {}]
  %s6 = inlined_call_operand.hbm [shape: f32[128,128], index: 6, kind: input, shape index: {}]
  %s7 = inlined_call_operand.vmem [shape: f32[1,128], index: 7, kind: input, shape index: {}]
  %s8 = inlined_call_operand.hbm [shape: f32[64,128], index: 8, kind: output, shape index: {}]
  %s9 = sld [smem:[#allocation0]]
  $region62: #{tpu_custom_call.1} parent=0
    _
  %s11 = ssub.s32 1, %s9
  %s12 = scalar_select 0, %s11, %s9
  $region1: #{tpu_custom_call.1} parent=0
    #allocation3 [shape = 'u8[16384]{0}', space=vmem, size = 0x4000, scoped, tag = 'input window, operand 0, single buffered']
    #allocation4 [shape = 's32[1]{0}', space=sflag, size = 0x4, scoped, tag = 'scoped memory for tpu_custom_call.1']
    #allocation5 [shape = 's32[1]{0}', space=sflag, size = 0x4, scoped, tag = 'scoped memory for tpu_custom_call.1']
    #allocation6 [shape = 'u8[32768]{0}', space=vmem, size = 0x8000, scoped, tag = 'input window, operand 1, single buffered']
    #allocation7 [shape = 's32[1]{0}', space=sflag, size = 0x4, scoped, tag = 'scoped memory for tpu_custom_call.1']
    #allocation8 [shape = 'u8[65536]{0}', space=vmem, size = 0x10000, scoped, tag = 'input window, operand 2, single buffered']
    #allocation9 [shape = 'u8[131072]{0}', space=vmem, size = 0x20000, scoped, tag = 'input window, operand 4, single buffered']
    #allocation10 [shape = 's32[1]{0}', space=sflag, size = 0x4, scoped, tag = 'scoped memory for tpu_custom_call.1']
    #allocation11 [shape = 'u8[65536]{0}', space=vmem, size = 0x10000, scoped, tag = 'input window, operand 6, single buffered']
    #allocation12 [shape = 'u8[32768]{0}', space=vmem, size = 0x8000, scoped, tag = 'output window, operand 0, single buffered']
    %13 = vsyncpa [#allocation4], 0
    %14 = vsyncpa [#allocation7], 0
    %15 = vsyncpa [#allocation10], 0
    %16 = vsyncpa [#allocation5], 0
    // Predicated region
    $region2: #{tpu_custom_call.1} parent=1 // pred_check
      _
    $region3: #{tpu_custom_call.1} parent=1 // pred_check_branch
      %18 = sbr.rel (0) target = $region5
    $region4: #{tpu_custom_call.1} parent=1 // pred_region
      %s20 = ssub.s32 512, 512
      %21 = vsyncadd [#allocation4], %s20
      %s22 = sshll.u32 [#allocation3], 4
      %s23 = int_to_ptr.vmem [resolvable:$true] %s22
      %28 = dma.hbm_to_vmem [thread:$0]  %s0, 512, %s23, [#allocation4], 64, 64, 4
    $region5: #{tpu_custom_call.1} parent=1 // pred_fallthru
      _
    // Predicated region
    $region6: #{tpu_custom_call.1} parent=1 // pred_check
      _
    $region7: #{tpu_custom_call.1} parent=1 // pred_check_branch
      %30 = sbr.rel (0) target = $region9
    $region8: #{tpu_custom_call.1} parent=1 // pred_region
      %s32 = ssub.s32 1024, 1024
      %33 = vsyncadd [#allocation7], %s32
      %s34 = sshll.u32 [#allocation6], 4
      %s35 = int_to_ptr.vmem [resolvable:$true] %s34
      %40 = dma.hbm_to_vmem [thread:$0]  %s1, 1024, %s35, [#allocation7], 128, 128, 8
    $region9: #{tpu_custom_call.1} parent=1 // pred_fallthru
      _
    // Predicated region
    $region10: #{tpu_custom_call.1} parent=1 // pred_check
      _
    $region11: #{tpu_custom_call.1} parent=1 // pred_check_branch
      %42 = sbr.rel (0) target = $region13
    $region12: #{tpu_custom_call.1} parent=1 // pred_region
      %s44 = ssub.s32 2048, 2048
      %45 = vsyncadd [#allocation7], %s44
      %s46 = sshll.u32 [#allocation8], 4
      %s47 = int_to_ptr.vmem [resolvable:$true] %s46
      %52 = dma.hbm_to_vmem [thread:$0]  %s2, 2048, %s47, [#allocation7], 128, 128, 8
    $region13: #{tpu_custom_call.1} parent=1 // pred_fallthru
      _
    // Predicated region
    $region14: #{tpu_custom_call.1} parent=1 // pred_check
      _
    $region15: #{tpu_custom_call.1} parent=1 // pred_check_branch
      %54 = sbr.rel (0) target = $region17
    $region16: #{tpu_custom_call.1} parent=1 // pred_region
      _
    $region17: #{tpu_custom_call.1} parent=1 // pred_fallthru
      _
    // Predicated region
    $region18: #{tpu_custom_call.1} parent=1 // pred_check
      _
    $region19: #{tpu_custom_call.1} parent=1 // pred_check_branch
      %56 = sbr.rel (0) target = $region21
    $region20: #{tpu_custom_call.1} parent=1 // pred_region
      %s58 = ssub.s32 4096, 4096
      %59 = vsyncadd [#allocation10], %s58
      %s60 = sshll.u32 [#allocation9], 4
      %s61 = int_to_ptr.vmem [resolvable:$true] %s60
      %66 = dma.hbm_to_vmem [thread:$0]  %s4, 4096, %s61, [#allocation10], 128, 128, 8
    $region21: #{tpu_custom_call.1} parent=1 // pred_fallthru
      _
    // Predicated region
    $region22: #{tpu_custom_call.1} parent=1 // pred_check
      _
    $region23: #{tpu_custom_call.1} parent=1 // pred_check_branch
      %68 = sbr.rel (0) target = $region25
    $region24: #{tpu_custom_call.1} parent=1 // pred_region
      _
    $region25: #{tpu_custom_call.1} parent=1 // pred_fallthru
      _
    // Predicated region
    $region26: #{tpu_custom_call.1} parent=1 // pred_check
      _
    $region27: #{tpu_custom_call.1} parent=1 // pred_check_branch
      %70 = sbr.rel (0) target = $region29
    $region28: #{tpu_custom_call.1} parent=1 // pred_region
      %s72 = ssub.s32 2048, 2048
      %73 = vsyncadd [#allocation10], %s72
      %s74 = sshll.u32 [#allocation11], 4
      %s75 = int_to_ptr.vmem [resolvable:$true] %s74
      %80 = dma.hbm_to_vmem [thread:$0]  %s6, 2048, %s75, [#allocation10], 128, 128, 8
    $region29: #{tpu_custom_call.1} parent=1 // pred_fallthru
      _
    // Predicated region
    $region30: #{tpu_custom_call.1} parent=1 // pred_check
      _
    $region31: #{tpu_custom_call.1} parent=1 // pred_check_branch
      %82 = sbr.rel (0) target = $region33
    $region32: #{tpu_custom_call.1} parent=1 // pred_region
      _
    $region33: #{tpu_custom_call.1} parent=1 // pred_fallthru
      _
    // Predicated region
    $region34: #{tpu_custom_call.1} parent=1 // pred_check
      _
    $region35: #{tpu_custom_call.1} parent=1 // pred_check_branch
      %84 = sbr.rel (0) target = $region37
    $region36: #{tpu_custom_call.1} parent=1 // pred_region
      %85 = dma.done [#allocation4], 512
    $region37: #{tpu_custom_call.1} parent=1 // pred_fallthru
      _
    // Predicated region
    $region38: #{tpu_custom_call.1} parent=1 // pred_check
      _
    $region39: #{tpu_custom_call.1} parent=1 // pred_check_branch
      %87 = sbr.rel (0) target = $region41
    $region40: #{tpu_custom_call.1} parent=1 // pred_region
      %88 = dma.done [#allocation7], 1024
    $region41: #{tpu_custom_call.1} parent=1 // pred_fallthru
      _
    // Predicated region
    $region42: #{tpu_custom_call.1} parent=1 // pred_check
      _
    $region43: #{tpu_custom_call.1} parent=1 // pred_check_branch
      %90 = sbr.rel (0) target = $region45
    $region44: #{tpu_custom_call.1} parent=1 // pred_region
      %91 = dma.done [#allocation7], 2048
    $region45: #{tpu_custom_call.1} parent=1 // pred_fallthru
      _
    // Predicated region
    $region46: #{tpu_custom_call.1} parent=1 // pred_check
      _
    $region47: #{tpu_custom_call.1} parent=1 // pred_check_branch
      %93 = sbr.rel (0) target = $region49
    $region48: #{tpu_custom_call.1} parent=1 // pred_region
      %94 = dma.done [#allocation10], 4096
    $region49: #{tpu_custom_call.1} parent=1 // pred_fallthru
      _
    // Predicated region
    $region50: #{tpu_custom_call.1} parent=1 // pred_check
      _
    $region51: #{tpu_custom_call.1} parent=1 // pred_check_branch
      %96 = sbr.rel (0) target = $region53
    $region52: #{tpu_custom_call.1} parent=1 // pred_region
      %97 = dma.done [#allocation10], 2048
    $region53: #{tpu_custom_call.1} parent=1 // pred_fallthru
      _
    %v99 = vld [vmem:[#allocation3] sm:$0xf]
    %v100 = vld [vmem:[#allocation3 + $0x4] sm:$0xf]
    %v101 = vld [vmem:[#allocation3 + $0x8] sm:$0xf]
    %v102 = vld [vmem:[#allocation3 + $0xc] sm:$0xf]
    %v103 = vld [vmem:[#allocation3 + $0x10] sm:$0xf]
    %v104 = vld [vmem:[#allocation3 + $0x14] sm:$0xf]
    %v105 = vld [vmem:[#allocation3 + $0x18] sm:$0xf]
    %v106 = vld [vmem:[#allocation3 + $0x1c] sm:$0xf]
    %v107 = vld [vmem:[#allocation6] sm:$0xff]
    %v108 = vld [vmem:[#allocation6 + $0x8] sm:$0xff]
    %v109 = vld [vmem:[#allocation6 + $0x10] sm:$0xff]
    %v110 = vld [vmem:[#allocation6 + $0x18] sm:$0xff]
    %v111 = vld [vmem:[#allocation6 + $0x20] sm:$0xff]
    %v112 = vld [vmem:[#allocation6 + $0x28] sm:$0xff]
    %v113 = vld [vmem:[#allocation6 + $0x30] sm:$0xff]
    %v114 = vld [vmem:[#allocation6 + $0x38] sm:$0xff]
    %v115 = vld [vmem:[#allocation8] sm:$0xff]
    %v116 = vld [vmem:[#allocation8 + $0x8] sm:$0xff]
    %v117 = vld [vmem:[#allocation8 + $0x10] sm:$0xff]
    %v118 = vld [vmem:[#allocation8 + $0x18] sm:$0xff]
    %v119 = vld [vmem:[#allocation8 + $0x20] sm:$0xff]
    %v120 = vld [vmem:[#allocation8 + $0x28] sm:$0xff]
    %v121 = vld [vmem:[#allocation8 + $0x30] sm:$0xff]
    %v122 = vld [vmem:[#allocation8 + $0x38] sm:$0xff]
    %v123 = vld [vmem:[#allocation8 + $0x40] sm:$0xff]
    %v124 = vld [vmem:[#allocation8 + $0x48] sm:$0xff]
    %v125 = vld [vmem:[#allocation8 + $0x50] sm:$0xff]
    %v126 = vld [vmem:[#allocation8 + $0x58] sm:$0xff]
    %v127 = vld [vmem:[#allocation8 + $0x60] sm:$0xff]
    %v128 = vld [vmem:[#allocation8 + $0x68] sm:$0xff]
    %v129 = vld [vmem:[#allocation8 + $0x70] sm:$0xff]
    %v130 = vld [vmem:[#allocation8 + $0x78] sm:$0xff]
    %v131 = vld [vmem:[%s3] sm:$0x1]
    %v133 = vlaneseq
    %v134 = vshrl.u32 %v133, 7
    %v135 = vsub.s32 0, %v134
    %v136 = vrot.slane %v131, %v135
    %138 = vmatprep.subr.mxu0 0.0
    %139 = vmatpush1.msra.mxu0 %v115
    %140 = vmatprep.subr.mxu0 0.0
    %141 = vmatpush1.msra.mxu0 %v116
    %142 = vmatprep.subr.mxu0 0.0
    %143 = vmatpush1.msra.mxu0 %v117
    %144 = vmatprep.subr.mxu0 0.0
    %145 = vmatpush1.msra.mxu0 %v118
    %146 = vmatprep.subr.mxu0 0.0
    %147 = vmatpush1.msra.mxu0 %v119
    %148 = vmatprep.subr.mxu0 0.0
    %149 = vmatpush1.msra.mxu0 %v120
    %150 = vmatprep.subr.mxu0 0.0
    %151 = vmatpush1.msra.mxu0 %v121
    %152 = vmatprep.subr.mxu0 0.0
    %153 = vmatpush1.msra.mxu0 %v122
    %154 = vmatprep.subr.mxu0 0.0
    %155 = vmatpush1.msra.mxu0 %v123
    %156 = vmatprep.subr.mxu0 0.0
    %157 = vmatpush1.msra.mxu0 %v124
    %158 = vmatprep.subr.mxu0 0.0
    %159 = vmatpush1.msra.mxu0 %v125
    %160 = vmatprep.subr.mxu0 0.0
    %161 = vmatpush1.msra.mxu0 %v126
    %162 = vmatprep.subr.mxu0 0.0
    %163 = vmatpush1.msra.mxu0 %v127
    %164 = vmatprep.subr.mxu0 0.0
    %165 = vmatpush1.msra.mxu0 %v128
    %166 = vmatprep.subr.mxu0 0.0
    %167 = vmatpush1.msra.mxu0 %v129
    %168 = vmatprep.subr.mxu0 0.0
    %169 = vmatpush1.msra.mxu0 %v130
    %170 = vmatprep.subr.mxu0 0.0
    %171 = vmatpush1.msra.mxu0 0.0
    %172 = vmatprep.subr.mxu0 0.0
    %173 = vmatpush1.msra.mxu0 0.0
    %174 = vmatprep.subr.mxu0 0.0
    %175 = vmatpush1.msra.mxu0 0.0
    %176 = vmatprep.subr.mxu0 0.0
    %177 = vmatpush1.msra.mxu0 0.0
    %178 = vmatprep.subr.mxu0 0.0
    %179 = vmatpush1.msra.mxu0 0.0
    %180 = vmatprep.subr.mxu0 0.0
    %181 = vmatpush1.msra.mxu0 0.0
    %182 = vmatprep.subr.mxu0 0.0
    %183 = vmatpush1.msra.mxu0 0.0
    %184 = vmatprep.subr.mxu0 0.0
    %185 = vmatpush1.msra.mxu0 0.0
    %186 = vmatprep.subr.mxu0 0.0
    %187 = vmatpush1.msra.mxu0 0.0
    %188 = vmatprep.subr.mxu0 0.0
    %189 = vmatpush1.msra.mxu0 0.0
    %190 = vmatprep.subr.mxu0 0.0
    %191 = vmatpush1.msra.mxu0 0.0
    %192 = vmatprep.subr.mxu0 0.0
    %193 = vmatpush1.msra.mxu0 0.0
    %194 = vmatprep.subr.mxu0 0.0
    %195 = vmatpush1.msra.mxu0 0.0
    %196 = vmatprep.subr.mxu0 0.0
    %197 = vmatpush1.msra.mxu0 0.0
    %198 = vmatprep.subr.mxu0 0.0
    %199 = vmatpush1.msra.mxu0 0.0
    %200 = vmatprep.subr.mxu0 0.0
    %201 = vmatpush1.msra.mxu0 0.0
    %202 = vmatprep.mubr.f32.mxu0 0.0
    %203 = vmatmul.mubr.f32.gmra.mrb[0].mxu0 %v107
    %v204 = vpop.f32.mrb[0].mxu0
    %v205 = vadd.f32 %v136, %v204
    %v206 = vpop.f32.mrb[0].mxu0
    %207 = vmatprep.mubr.f32.mxu0 0.0
    %208 = vmatmul.mubr.f32.gmra.mrb[0].mxu0 %v108
    %v209 = vpop.f32.mrb[0].mxu0
    %v210 = vadd.f32 %v136, %v209
    %v211 = vpop.f32.mrb[0].mxu0
    %212 = vmatprep.mubr.f32.mxu0 0.0
    %213 = vmatmul.mubr.f32.gmra.mrb[0].mxu0 %v109
    %v214 = vpop.f32.mrb[0].mxu0
    %v215 = vadd.f32 %v136, %v214
    %v216 = vpop.f32.mrb[0].mxu0
    %217 = vmatprep.mubr.f32.mxu0 0.0
    %218 = vmatmul.mubr.f32.gmra.mrb[0].mxu0 %v110
    %v219 = vpop.f32.mrb[0].mxu0
    %v220 = vadd.f32 %v136, %v219
    %v221 = vpop.f32.mrb[0].mxu0
    %222 = vmatprep.mubr.f32.mxu0 0.0
    %223 = vmatmul.mubr.f32.gmra.mrb[0].mxu0 %v111
    %v224 = vpop.f32.mrb[0].mxu0
    %v225 = vadd.f32 %v136, %v224
    %v226 = vpop.f32.mrb[0].mxu0
    %227 = vmatprep.mubr.f32.mxu0 0.0
    %228 = vmatmul.mubr.f32.gmra.mrb[0].mxu0 %v112
    %v229 = vpop.f32.mrb[0].mxu0
    %v230 = vadd.f32 %v136, %v229
    %v231 = vpop.f32.mrb[0].mxu0
    %232 = vmatprep.mubr.f32.mxu0 0.0
    %233 = vmatmul.mubr.f32.gmra.mrb[0].mxu0 %v113
    %v234 = vpop.f32.mrb[0].mxu0
    %v235 = vadd.f32 %v136, %v234
    %v236 = vpop.f32.mrb[0].mxu0
    %237 = vmatprep.mubr.f32.mxu0 0.0
    %238 = vmatmul.mubr.f32.gmra.mrb[0].mxu0 %v114
    %v239 = vpop.f32.mrb[0].mxu0
    %v240 = vadd.f32 %v136, %v239
    %v241 = vpop.f32.mrb[0].mxu0
    %242 = vdwg.mxu0
    %v243 = vmax.f32 %v205, 0.0
    %v244 = vmax.f32 %v210, 0.0
    %v245 = vmax.f32 %v215, 0.0
    %v246 = vmax.f32 %v220, 0.0
    %v247 = vmax.f32 %v225, 0.0
    %v248 = vmax.f32 %v230, 0.0
    %v249 = vmax.f32 %v235, 0.0
    %v250 = vmax.f32 %v240, 0.0
    %251 = vst [vmem:[#allocation2] sm:$0xff] %v243
    %252 = vst [vmem:[#allocation2 + $0x8] sm:$0xff] %v244
    %253 = vst [vmem:[#allocation2 + $0x10] sm:$0xff] %v245
    %254 = vst [vmem:[#allocation2 + $0x18] sm:$0xff] %v246
    %255 = vst [vmem:[#allocation2 + $0x20] sm:$0xff] %v247
    %256 = vst [vmem:[#allocation2 + $0x28] sm:$0xff] %v248
    %257 = vst [vmem:[#allocation2 + $0x30] sm:$0xff] %v249
    %258 = vst [vmem:[#allocation2 + $0x38] sm:$0xff] %v250
    %v259 = vld [vmem:[#allocation2] sm:$0xff]
    %v260 = vld [vmem:[#allocation2 + $0x8] sm:$0xff]
    %v261 = vld [vmem:[#allocation2 + $0x10] sm:$0xff]
    %v262 = vld [vmem:[#allocation2 + $0x18] sm:$0xff]
    %v263 = vld [vmem:[#allocation2 + $0x20] sm:$0xff]
    %v264 = vld [vmem:[#allocation2 + $0x28] sm:$0xff]
    %v265 = vld [vmem:[#allocation2 + $0x30] sm:$0xff]
    %v266 = vld [vmem:[#allocation2 + $0x38] sm:$0xff]
    %v267 = vld [vmem:[#allocation9] sm:$0xff]
    %v268 = vld [vmem:[#allocation9 + $0x8] sm:$0xff]
    %v269 = vld [vmem:[#allocation9 + $0x10] sm:$0xff]
    %v270 = vld [vmem:[#allocation9 + $0x18] sm:$0xff]
    %v271 = vld [vmem:[#allocation9 + $0x20] sm:$0xff]
    %v272 = vld [vmem:[#allocation9 + $0x28] sm:$0xff]
    %v273 = vld [vmem:[#allocation9 + $0x30] sm:$0xff]
    %v274 = vld [vmem:[#allocation9 + $0x38] sm:$0xff]
    %v275 = vld [vmem:[#allocation9 + $0x40] sm:$0xff]
    %v276 = vld [vmem:[#allocation9 + $0x48] sm:$0xff]
    %v277 = vld [vmem:[#allocation9 + $0x50] sm:$0xff]
    %v278 = vld [vmem:[#allocation9 + $0x58] sm:$0xff]
    %v279 = vld [vmem:[#allocation9 + $0x60] sm:$0xff]
    %v280 = vld [vmem:[#allocation9 + $0x68] sm:$0xff]
    %v281 = vld [vmem:[#allocation9 + $0x70] sm:$0xff]
    %v282 = vld [vmem:[#allocation9 + $0x78] sm:$0xff]
    %283 = vmatprep.subr.mxu0 0.0
    %284 = vmatpush1.msra.mxu0 %v267
    %285 = vmatprep.subr.mxu0 0.0
    %286 = vmatpush1.msra.mxu0 %v268
    %287 = vmatprep.subr.mxu0 0.0
    %288 = vmatpush1.msra.mxu0 %v269
    %289 = vmatprep.subr.mxu0 0.0
    %290 = vmatpush1.msra.mxu0 %v270
    %291 = vmatprep.subr.mxu0 0.0
    %292 = vmatpush1.msra.mxu0 %v271
    %293 = vmatprep.subr.mxu0 0.0
    %294 = vmatpush1.msra.mxu0 %v272
    %295 = vmatprep.subr.mxu0 0.0
    %296 = vmatpush1.msra.mxu0 %v273
    %297 = vmatprep.subr.mxu0 0.0
    %298 = vmatpush1.msra.mxu0 %v274
    %299 = vmatprep.subr.mxu0 0.0
    %300 = vmatpush1.msra.mxu0 %v275
    %301 = vmatprep.subr.mxu0 0.0
    %302 = vmatpush1.msra.mxu0 %v276
    %303 = vmatprep.subr.mxu0 0.0
    %304 = vmatpush1.msra.mxu0 %v277
    %305 = vmatprep.subr.mxu0 0.0
    %306 = vmatpush1.msra.mxu0 %v278
    %307 = vmatprep.subr.mxu0 0.0
    %308 = vmatpush1.msra.mxu0 %v279
    %309 = vmatprep.subr.mxu0 0.0
    %310 = vmatpush1.msra.mxu0 %v280
    %311 = vmatprep.subr.mxu0 0.0
    %312 = vmatpush1.msra.mxu0 %v281
    %313 = vmatprep.subr.mxu0 0.0
    %314 = vmatpush1.msra.mxu0 %v282
    %315 = vmatprep.subr.mxu0 0.0
    %316 = vmatpush1.msra.mxu0 0.0
    %317 = vmatprep.subr.mxu0 0.0
    %318 = vmatpush1.msra.mxu0 0.0
    %319 = vmatprep.subr.mxu0 0.0
    %320 = vmatpush1.msra.mxu0 0.0
    %321 = vmatprep.subr.mxu0 0.0
    %322 = vmatpush1.msra.mxu0 0.0
    %323 = vmatprep.subr.mxu0 0.0
    %324 = vmatpush1.msra.mxu0 0.0
    %325 = vmatprep.subr.mxu0 0.0
    %326 = vmatpush1.msra.mxu0 0.0
    %327 = vmatprep.subr.mxu0 0.0
    %328 = vmatpush1.msra.mxu0 0.0
    %329 = vmatprep.subr.mxu0 0.0
    %330 = vmatpush1.msra.mxu0 0.0
    %331 = vmatprep.subr.mxu0 0.0
    %332 = vmatpush1.msra.mxu0 0.0
    %333 = vmatprep.subr.mxu0 0.0
    %334 = vmatpush1.msra.mxu0 0.0
    %335 = vmatprep.subr.mxu0 0.0
    %336 = vmatpush1.msra.mxu0 0.0
    %337 = vmatprep.subr.mxu0 0.0
    %338 = vmatpush1.msra.mxu0 0.0
    %339 = vmatprep.subr.mxu0 0.0
    %340 = vmatpush1.msra.mxu0 0.0
    %341 = vmatprep.subr.mxu0 0.0
    %342 = vmatpush1.msra.mxu0 0.0
    %343 = vmatprep.subr.mxu0 0.0
    %344 = vmatpush1.msra.mxu0 0.0
    %345 = vmatprep.subr.mxu0 0.0
    %346 = vmatpush1.msra.mxu0 0.0
    %347 = vmatprep.mubr.f32.mxu0 0.0
    %348 = vmatmul.mubr.f32.gmra.mrb[0].mxu0 %v259
    %v349 = vpop.f32.mrb[0].mxu0
    %v350 = vadd.f32 0.0, %v349
    %v351 = vpop.f32.mrb[0].mxu0
    %352 = vmatprep.mubr.f32.mxu0 0.0
    %353 = vmatmul.mubr.f32.gmra.mrb[0].mxu0 %v260
    %v354 = vpop.f32.mrb[0].mxu0
    %v355 = vadd.f32 0.0, %v354
    %v356 = vpop.f32.mrb[0].mxu0
    %357 = vmatprep.mubr.f32.mxu0 0.0
    %358 = vmatmul.mubr.f32.gmra.mrb[0].mxu0 %v261
    %v359 = vpop.f32.mrb[0].mxu0
    %v360 = vadd.f32 0.0, %v359
    %v361 = vpop.f32.mrb[0].mxu0
    %362 = vmatprep.mubr.f32.mxu0 0.0
    %363 = vmatmul.mubr.f32.gmra.mrb[0].mxu0 %v262
    %v364 = vpop.f32.mrb[0].mxu0
    %v365 = vadd.f32 0.0, %v364
    %v366 = vpop.f32.mrb[0].mxu0
    %367 = vmatprep.mubr.f32.mxu0 0.0
    %368 = vmatmul.mubr.f32.gmra.mrb[0].mxu0 %v263
    %v369 = vpop.f32.mrb[0].mxu0
    %v370 = vadd.f32 0.0, %v369
    %v371 = vpop.f32.mrb[0].mxu0
    %372 = vmatprep.mubr.f32.mxu0 0.0
    %373 = vmatmul.mubr.f32.gmra.mrb[0].mxu0 %v264
    %v374 = vpop.f32.mrb[0].mxu0
    %v375 = vadd.f32 0.0, %v374
    %v376 = vpop.f32.mrb[0].mxu0
    %377 = vmatprep.mubr.f32.mxu0 0.0
    %378 = vmatmul.mubr.f32.gmra.mrb[0].mxu0 %v265
    %v379 = vpop.f32.mrb[0].mxu0
    %v380 = vadd.f32 0.0, %v379
    %v381 = vpop.f32.mrb[0].mxu0
    %382 = vmatprep.mubr.f32.mxu0 0.0
    %383 = vmatmul.mubr.f32.gmra.mrb[0].mxu0 %v266
    %v384 = vpop.f32.mrb[0].mxu0
    %v385 = vadd.f32 0.0, %v384
    %v386 = vpop.f32.mrb[0].mxu0
    %387 = vdwg.mxu0
    %v388 = vpack.c.bf16 %v355, %v350
    %v389 = vpack.c.bf16 %v365, %v360
    %v390 = vpack.c.bf16 %v375, %v370
    %v391 = vpack.c.bf16 %v385, %v380
    %v392 = vld [vmem:[%s5] sm:$0x1]
    %v394 = vlaneseq
    %v395 = vshrl.u32 %v394, 7
    %v396 = vsub.s32 0, %v395
    %v397 = vrot.slane %v392, %v396
    %v407 = vunpack.c.l.b16 %v99
    %v408 = vunpack.c.l.b16 %v100
    %v409 = vunpack.c.l.b16 %v101
    %v410 = vunpack.c.l.b16 %v102
    %v411 = vunpack.c.l.b16 %v103
    %v412 = vunpack.c.l.b16 %v104
    %v413 = vunpack.c.l.b16 %v105
    %v414 = vunpack.c.l.b16 %v106
    %v415 = vpack.c.b16 %v408, %v407
    %v416 = vpack.c.b16 %v410, %v409
    %v417 = vpack.c.b16 %v412, %v411
    %v418 = vpack.c.b16 %v414, %v413
    %vm419 = vcmask 523264
    %v421 = vsel %vm419, %v415, 0
    %v424 = vsel %vm419, %v416, 0
    %v427 = vsel %vm419, %v417, 0
    %v430 = vsel %vm419, %v418, 0
    %432 = vmatprep.subr.bf16.mxu0 0
    %433 = vmatpush1.bf16.msra.mxu0 %v388
    %434 = vmatprep.subr.bf16.mxu0 0
    %435 = vmatpush1.bf16.msra.mxu0 %v389
    %436 = vmatprep.subr.bf16.mxu0 0
    %437 = vmatpush1.bf16.msra.mxu0 %v390
    %438 = vmatprep.subr.bf16.mxu0 0
    %439 = vmatpush1.bf16.msra.mxu0 %v391
    %440 = vmatprep.subr.bf16.mxu0 0
    %441 = vmatpush1.bf16.msra.mxu0 0
    %442 = vmatprep.subr.bf16.mxu0 0
    %443 = vmatpush1.bf16.msra.mxu0 0
    %444 = vmatprep.subr.bf16.mxu0 0
    %445 = vmatpush1.bf16.msra.mxu0 0
    %446 = vmatprep.subr.bf16.mxu0 0
    %447 = vmatpush1.bf16.msra.mxu0 0
    %448 = vmatprep.subr.bf16.mxu0 0
    %449 = vmatpush1.bf16.msra.mxu0 0
    %450 = vmatprep.subr.bf16.mxu0 0
    %451 = vmatpush1.bf16.msra.mxu0 0
    %452 = vmatprep.subr.bf16.mxu0 0
    %453 = vmatpush1.bf16.msra.mxu0 0
    %454 = vmatprep.subr.bf16.mxu0 0
    %455 = vmatpush1.bf16.msra.mxu0 0
    %456 = vmatprep.subr.bf16.mxu0 0
    %457 = vmatpush1.bf16.msra.mxu0 0
    %458 = vmatprep.subr.bf16.mxu0 0
    %459 = vmatpush1.bf16.msra.mxu0 0
    %460 = vmatprep.subr.bf16.mxu0 0
    %461 = vmatpush1.bf16.msra.mxu0 0
    %462 = vmatprep.subr.bf16.mxu0 0
    %463 = vmatpush1.bf16.msra.mxu0 0
    %464 = vmatprep.mubr.bf16.mxu0 0
    %465 = vmatmul.mubr.bf16.gmra.mrb[0].mxu0 %v421
    %v466 = vpop.f32.mrb[0].mxu0
    %v467 = vadd.f32 %v397, %v466
    %v468 = vpop.f32.mrb[0].mxu0
    %v469 = vpop.f32.mrb[0].mxu0
    %v470 = vadd.f32 %v397, %v469
    %v471 = vpop.f32.mrb[0].mxu0
    %472 = vmatprep.mubr.bf16.mxu0 0
    %473 = vmatmul.mubr.bf16.gmra.mrb[0].mxu0 %v424
    %v474 = vpop.f32.mrb[0].mxu0
    %v475 = vadd.f32 %v397, %v474
    %v476 = vpop.f32.mrb[0].mxu0
    %v477 = vpop.f32.mrb[0].mxu0
    %v478 = vadd.f32 %v397, %v477
    %v479 = vpop.f32.mrb[0].mxu0
    %480 = vmatprep.mubr.bf16.mxu0 0
    %481 = vmatmul.mubr.bf16.gmra.mrb[0].mxu0 %v427
    %v482 = vpop.f32.mrb[0].mxu0
    %v483 = vadd.f32 %v397, %v482
    %v484 = vpop.f32.mrb[0].mxu0
    %v485 = vpop.f32.mrb[0].mxu0
    %v486 = vadd.f32 %v397, %v485
    %v487 = vpop.f32.mrb[0].mxu0
    %488 = vmatprep.mubr.bf16.mxu0 0
    %489 = vmatmul.mubr.bf16.gmra.mrb[0].mxu0 %v430
    %v490 = vpop.f32.mrb[0].mxu0
    %v491 = vadd.f32 %v397, %v490
    %v492 = vpop.f32.mrb[0].mxu0
    %v493 = vpop.f32.mrb[0].mxu0
    %v494 = vadd.f32 %v397, %v493
    %v495 = vpop.f32.mrb[0].mxu0
    %496 = vdwg.mxu0
    %v497 = vmax.f32 %v467, 0.0
    %v498 = vmax.f32 %v470, 0.0
    %v499 = vmax.f32 %v475, 0.0
    %v500 = vmax.f32 %v478, 0.0
    %v501 = vmax.f32 %v483, 0.0
    %v502 = vmax.f32 %v486, 0.0
    %v503 = vmax.f32 %v491, 0.0
    %v504 = vmax.f32 %v494, 0.0
    %505 = vst [vmem:[#allocation2] sm:$0xff] %v497
    %506 = vst [vmem:[#allocation2 + $0x8] sm:$0xff] %v498
    %507 = vst [vmem:[#allocation2 + $0x10] sm:$0xff] %v499
    %508 = vst [vmem:[#allocation2 + $0x18] sm:$0xff] %v500
    %509 = vst [vmem:[#allocation2 + $0x20] sm:$0xff] %v501
    %510 = vst [vmem:[#allocation2 + $0x28] sm:$0xff] %v502
    %511 = vst [vmem:[#allocation2 + $0x30] sm:$0xff] %v503
    %512 = vst [vmem:[#allocation2 + $0x38] sm:$0xff] %v504
    %v513 = vld [vmem:[#allocation2] sm:$0xff]
    %v514 = vld [vmem:[#allocation2 + $0x8] sm:$0xff]
    %v515 = vld [vmem:[#allocation2 + $0x10] sm:$0xff]
    %v516 = vld [vmem:[#allocation2 + $0x18] sm:$0xff]
    %v517 = vld [vmem:[#allocation2 + $0x20] sm:$0xff]
    %v518 = vld [vmem:[#allocation2 + $0x28] sm:$0xff]
    %v519 = vld [vmem:[#allocation2 + $0x30] sm:$0xff]
    %v520 = vld [vmem:[#allocation2 + $0x38] sm:$0xff]
    %s521 = scalar_lea.vmem [#allocation9], 128
    %v522 = vld [vmem:[%s521] sm:$0xff]
    %v523 = vld [vmem:[%s521 + $0x8] sm:$0xff]
    %v524 = vld [vmem:[%s521 + $0x10] sm:$0xff]
    %v525 = vld [vmem:[%s521 + $0x18] sm:$0xff]
    %v526 = vld [vmem:[%s521 + $0x20] sm:$0xff]
    %v527 = vld [vmem:[%s521 + $0x28] sm:$0xff]
    %v528 = vld [vmem:[%s521 + $0x30] sm:$0xff]
    %v529 = vld [vmem:[%s521 + $0x38] sm:$0xff]
    %v530 = vld [vmem:[%s521 + $0x40] sm:$0xff]
    %v531 = vld [vmem:[%s521 + $0x48] sm:$0xff]
    %v532 = vld [vmem:[%s521 + $0x50] sm:$0xff]
    %v533 = vld [vmem:[%s521 + $0x58] sm:$0xff]
    %v534 = vld [vmem:[%s521 + $0x60] sm:$0xff]
    %v535 = vld [vmem:[%s521 + $0x68] sm:$0xff]
    %v536 = vld [vmem:[%s521 + $0x70] sm:$0xff]
    %v537 = vld [vmem:[%s521 + $0x78] sm:$0xff]
    %538 = vmatprep.subr.mxu0 0.0
    %539 = vmatpush1.msra.mxu0 %v522
    %540 = vmatprep.subr.mxu0 0.0
    %541 = vmatpush1.msra.mxu0 %v523
    %542 = vmatprep.subr.mxu0 0.0
    %543 = vmatpush1.msra.mxu0 %v524
    %544 = vmatprep.subr.mxu0 0.0
    %545 = vmatpush1.msra.mxu0 %v525
    %546 = vmatprep.subr.mxu0 0.0
    %547 = vmatpush1.msra.mxu0 %v526
    %548 = vmatprep.subr.mxu0 0.0
    %549 = vmatpush1.msra.mxu0 %v527
    %550 = vmatprep.subr.mxu0 0.0
    %551 = vmatpush1.msra.mxu0 %v528
    %552 = vmatprep.subr.mxu0 0.0
    %553 = vmatpush1.msra.mxu0 %v529
    %554 = vmatprep.subr.mxu0 0.0
    %555 = vmatpush1.msra.mxu0 %v530
    %556 = vmatprep.subr.mxu0 0.0
    %557 = vmatpush1.msra.mxu0 %v531
    %558 = vmatprep.subr.mxu0 0.0
    %559 = vmatpush1.msra.mxu0 %v532
    %560 = vmatprep.subr.mxu0 0.0
    %561 = vmatpush1.msra.mxu0 %v533
    %562 = vmatprep.subr.mxu0 0.0
    %563 = vmatpush1.msra.mxu0 %v534
    %564 = vmatprep.subr.mxu0 0.0
    %565 = vmatpush1.msra.mxu0 %v535
    %566 = vmatprep.subr.mxu0 0.0
    %567 = vmatpush1.msra.mxu0 %v536
    %568 = vmatprep.subr.mxu0 0.0
    %569 = vmatpush1.msra.mxu0 %v537
    %570 = vmatprep.subr.mxu0 0.0
    %571 = vmatpush1.msra.mxu0 0.0
    %572 = vmatprep.subr.mxu0 0.0
    %573 = vmatpush1.msra.mxu0 0.0
    %574 = vmatprep.subr.mxu0 0.0
    %575 = vmatpush1.msra.mxu0 0.0
    %576 = vmatprep.subr.mxu0 0.0
    %577 = vmatpush1.msra.mxu0 0.0
    %578 = vmatprep.subr.mxu0 0.0
    %579 = vmatpush1.msra.mxu0 0.0
    %580 = vmatprep.subr.mxu0 0.0
    %581 = vmatpush1.msra.mxu0 0.0
    %582 = vmatprep.subr.mxu0 0.0
    %583 = vmatpush1.msra.mxu0 0.0
    %584 = vmatprep.subr.mxu0 0.0
    %585 = vmatpush1.msra.mxu0 0.0
    %586 = vmatprep.subr.mxu0 0.0
    %587 = vmatpush1.msra.mxu0 0.0
    %588 = vmatprep.subr.mxu0 0.0
    %589 = vmatpush1.msra.mxu0 0.0
    %590 = vmatprep.subr.mxu0 0.0
    %591 = vmatpush1.msra.mxu0 0.0
    %592 = vmatprep.subr.mxu0 0.0
    %593 = vmatpush1.msra.mxu0 0.0
    %594 = vmatprep.subr.mxu0 0.0
    %595 = vmatpush1.msra.mxu0 0.0
    %596 = vmatprep.subr.mxu0 0.0
    %597 = vmatpush1.msra.mxu0 0.0
    %598 = vmatprep.subr.mxu0 0.0
    %599 = vmatpush1.msra.mxu0 0.0
    %600 = vmatprep.subr.mxu0 0.0
    %601 = vmatpush1.msra.mxu0 0.0
    %602 = vmatprep.mubr.f32.mxu0 0.0
    %603 = vmatmul.mubr.f32.gmra.mrb[0].mxu0 %v513
    %v604 = vpop.f32.mrb[0].mxu0
    %v605 = vadd.f32 0.0, %v604
    %v606 = vpop.f32.mrb[0].mxu0
    %607 = vmatprep.mubr.f32.mxu0 0.0
    %608 = vmatmul.mubr.f32.gmra.mrb[0].mxu0 %v514
    %v609 = vpop.f32.mrb[0].mxu0
    %v610 = vadd.f32 0.0, %v609
    %v611 = vpop.f32.mrb[0].mxu0
    %612 = vmatprep.mubr.f32.mxu0 0.0
    %613 = vmatmul.mubr.f32.gmra.mrb[0].mxu0 %v515
    %v614 = vpop.f32.mrb[0].mxu0
    %v615 = vadd.f32 0.0, %v614
    %v616 = vpop.f32.mrb[0].mxu0
    %617 = vmatprep.mubr.f32.mxu0 0.0
    %618 = vmatmul.mubr.f32.gmra.mrb[0].mxu0 %v516
    %v619 = vpop.f32.mrb[0].mxu0
    %v620 = vadd.f32 0.0, %v619
    %v621 = vpop.f32.mrb[0].mxu0
    %622 = vmatprep.mubr.f32.mxu0 0.0
    %623 = vmatmul.mubr.f32.gmra.mrb[0].mxu0 %v517
    %v624 = vpop.f32.mrb[0].mxu0
    %v625 = vadd.f32 0.0, %v624
    %v626 = vpop.f32.mrb[0].mxu0
    %627 = vmatprep.mubr.f32.mxu0 0.0
    %628 = vmatmul.mubr.f32.gmra.mrb[0].mxu0 %v518
    %v629 = vpop.f32.mrb[0].mxu0
    %v630 = vadd.f32 0.0, %v629
    %v631 = vpop.f32.mrb[0].mxu0
    %632 = vmatprep.mubr.f32.mxu0 0.0
    %633 = vmatmul.mubr.f32.gmra.mrb[0].mxu0 %v519
    %v634 = vpop.f32.mrb[0].mxu0
    %v635 = vadd.f32 0.0, %v634
    %v636 = vpop.f32.mrb[0].mxu0
    %637 = vmatprep.mubr.f32.mxu0 0.0
    %638 = vmatmul.mubr.f32.gmra.mrb[0].mxu0 %v520
    %v639 = vpop.f32.mrb[0].mxu0
    %v640 = vadd.f32 0.0, %v639
    %v641 = vpop.f32.mrb[0].mxu0
    %642 = vdwg.mxu0
    %v643 = vpack.c.bf16 %v610, %v605
    %v644 = vpack.c.bf16 %v620, %v615
    %v645 = vpack.c.bf16 %v630, %v625
    %v646 = vpack.c.bf16 %v640, %v635
    %s647 = scalar_lea.vmem %s5, 1
    %v648 = vld [vmem:[%s647] sm:$0x1]
    %v650 = vlaneseq
    %v651 = vshrl.u32 %v650, 7
    %v652 = vsub.s32 0, %v651
    %v653 = vrot.slane %v648, %v652
    %655 = vmatprep.subr.bf16.mxu0 0
    %656 = vmatpush1.bf16.msra.mxu0 %v643
    %657 = vmatprep.subr.bf16.mxu0 0
    %658 = vmatpush1.bf16.msra.mxu0 %v644
    %659 = vmatprep.subr.bf16.mxu0 0
    %660 = vmatpush1.bf16.msra.mxu0 %v645
    %661 = vmatprep.subr.bf16.mxu0 0
    %662 = vmatpush1.bf16.msra.mxu0 %v646
    %663 = vmatprep.subr.bf16.mxu0 0
    %664 = vmatpush1.bf16.msra.mxu0 0
    %665 = vmatprep.subr.bf16.mxu0 0
    %666 = vmatpush1.bf16.msra.mxu0 0
    %667 = vmatprep.subr.bf16.mxu0 0
    %668 = vmatpush1.bf16.msra.mxu0 0
    %669 = vmatprep.subr.bf16.mxu0 0
    %670 = vmatpush1.bf16.msra.mxu0 0
    %671 = vmatprep.subr.bf16.mxu0 0
    %672 = vmatpush1.bf16.msra.mxu0 0
    %673 = vmatprep.subr.bf16.mxu0 0
    %674 = vmatpush1.bf16.msra.mxu0 0
    %675 = vmatprep.subr.bf16.mxu0 0
    %676 = vmatpush1.bf16.msra.mxu0 0
    %677 = vmatprep.subr.bf16.mxu0 0
    %678 = vmatpush1.bf16.msra.mxu0 0
    %679 = vmatprep.subr.bf16.mxu0 0
    %680 = vmatpush1.bf16.msra.mxu0 0
    %681 = vmatprep.subr.bf16.mxu0 0
    %682 = vmatpush1.bf16.msra.mxu0 0
    %683 = vmatprep.subr.bf16.mxu0 0
    %684 = vmatpush1.bf16.msra.mxu0 0
    %685 = vmatprep.subr.bf16.mxu0 0
    %686 = vmatpush1.bf16.msra.mxu0 0
    %687 = vmatprep.mubr.bf16.mxu0 0
    %688 = vmatmul.mubr.bf16.gmra.mrb[0].mxu0 %v421
    %v689 = vpop.f32.mrb[0].mxu0
    %v690 = vadd.f32 %v653, %v689
    %v691 = vpop.f32.mrb[0].mxu0
    %v692 = vpop.f32.mrb[0].mxu0
    %v693 = vadd.f32 %v653, %v692
    %v694 = vpop.f32.mrb[0].mxu0
    %695 = vmatprep.mubr.bf16.mxu0 0
    %696 = vmatmul.mubr.bf16.gmra.mrb[0].mxu0 %v424
    %v697 = vpop.f32.mrb[0].mxu0
    %v698 = vadd.f32 %v653, %v697
    %v699 = vpop.f32.mrb[0].mxu0
    %v700 = vpop.f32.mrb[0].mxu0
    %v701 = vadd.f32 %v653, %v700
    %v702 = vpop.f32.mrb[0].mxu0
    %703 = vmatprep.mubr.bf16.mxu0 0
    %704 = vmatmul.mubr.bf16.gmra.mrb[0].mxu0 %v427
    %v705 = vpop.f32.mrb[0].mxu0
    %v706 = vadd.f32 %v653, %v705
    %v707 = vpop.f32.mrb[0].mxu0
    %v708 = vpop.f32.mrb[0].mxu0
    %v709 = vadd.f32 %v653, %v708
    %v710 = vpop.f32.mrb[0].mxu0
    %711 = vmatprep.mubr.bf16.mxu0 0
    %712 = vmatmul.mubr.bf16.gmra.mrb[0].mxu0 %v430
    %v713 = vpop.f32.mrb[0].mxu0
    %v714 = vadd.f32 %v653, %v713
    %v715 = vpop.f32.mrb[0].mxu0
    %v716 = vpop.f32.mrb[0].mxu0
    %v717 = vadd.f32 %v653, %v716
    %v718 = vpop.f32.mrb[0].mxu0
    %719 = vdwg.mxu0
    %720 = vst [vmem:[#allocation2] sm:$0xff] %v690
    %721 = vst [vmem:[#allocation2 + $0x8] sm:$0xff] %v693
    %722 = vst [vmem:[#allocation2 + $0x10] sm:$0xff] %v698
    %723 = vst [vmem:[#allocation2 + $0x18] sm:$0xff] %v701
    %724 = vst [vmem:[#allocation2 + $0x20] sm:$0xff] %v706
    %725 = vst [vmem:[#allocation2 + $0x28] sm:$0xff] %v709
    %726 = vst [vmem:[#allocation2 + $0x30] sm:$0xff] %v714
    %727 = vst [vmem:[#allocation2 + $0x38] sm:$0xff] %v717
    %v728 = vld [vmem:[#allocation2] sm:$0xff]
    %v729 = vld [vmem:[#allocation2 + $0x8] sm:$0xff]
    %v730 = vld [vmem:[#allocation2 + $0x10] sm:$0xff]
    %v731 = vld [vmem:[#allocation2 + $0x18] sm:$0xff]
    %v732 = vld [vmem:[#allocation2 + $0x20] sm:$0xff]
    %v733 = vld [vmem:[#allocation2 + $0x28] sm:$0xff]
    %v734 = vld [vmem:[#allocation2 + $0x30] sm:$0xff]
    %v735 = vld [vmem:[#allocation2 + $0x38] sm:$0xff]
    %v736 = vld [vmem:[#allocation11] sm:$0xff]
    %v737 = vld [vmem:[#allocation11 + $0x8] sm:$0xff]
    %v738 = vld [vmem:[#allocation11 + $0x10] sm:$0xff]
    %v739 = vld [vmem:[#allocation11 + $0x18] sm:$0xff]
    %v740 = vld [vmem:[#allocation11 + $0x20] sm:$0xff]
    %v741 = vld [vmem:[#allocation11 + $0x28] sm:$0xff]
    %v742 = vld [vmem:[#allocation11 + $0x30] sm:$0xff]
    %v743 = vld [vmem:[#allocation11 + $0x38] sm:$0xff]
    %v744 = vld [vmem:[#allocation11 + $0x40] sm:$0xff]
    %v745 = vld [vmem:[#allocation11 + $0x48] sm:$0xff]
    %v746 = vld [vmem:[#allocation11 + $0x50] sm:$0xff]
    %v747 = vld [vmem:[#allocation11 + $0x58] sm:$0xff]
    %v748 = vld [vmem:[#allocation11 + $0x60] sm:$0xff]
    %v749 = vld [vmem:[#allocation11 + $0x68] sm:$0xff]
    %v750 = vld [vmem:[#allocation11 + $0x70] sm:$0xff]
    %v751 = vld [vmem:[#allocation11 + $0x78] sm:$0xff]
    %v752 = vld [vmem:[%s7] sm:$0x1]
    %v754 = vlaneseq
    %v755 = vshrl.u32 %v754, 7
    %v756 = vsub.s32 0, %v755
    %v757 = vrot.slane %v752, %v756
    %759 = vmatprep.subr.mxu0 0.0
    %760 = vmatpush1.msra.mxu0 %v736
    %761 = vmatprep.subr.mxu0 0.0
    %762 = vmatpush1.msra.mxu0 %v737
    %763 = vmatprep.subr.mxu0 0.0
    %764 = vmatpush1.msra.mxu0 %v738
    %765 = vmatprep.subr.mxu0 0.0
    %766 = vmatpush1.msra.mxu0 %v739
    %767 = vmatprep.subr.mxu0 0.0
    %768 = vmatpush1.msra.mxu0 %v740
    %769 = vmatprep.subr.mxu0 0.0
    %770 = vmatpush1.msra.mxu0 %v741
    %771 = vmatprep.subr.mxu0 0.0
    %772 = vmatpush1.msra.mxu0 %v742
    %773 = vmatprep.subr.mxu0 0.0
    %774 = vmatpush1.msra.mxu0 %v743
    %775 = vmatprep.subr.mxu0 0.0
    %776 = vmatpush1.msra.mxu0 %v744
    %777 = vmatprep.subr.mxu0 0.0
    %778 = vmatpush1.msra.mxu0 %v745
    %779 = vmatprep.subr.mxu0 0.0
    %780 = vmatpush1.msra.mxu0 %v746
    %781 = vmatprep.subr.mxu0 0.0
    %782 = vmatpush1.msra.mxu0 %v747
    %783 = vmatprep.subr.mxu0 0.0
    %784 = vmatpush1.msra.mxu0 %v748
    %785 = vmatprep.subr.mxu0 0.0
    %786 = vmatpush1.msra.mxu0 %v749
    %787 = vmatprep.subr.mxu0 0.0
    %788 = vmatpush1.msra.mxu0 %v750
    %789 = vmatprep.subr.mxu0 0.0
    %790 = vmatpush1.msra.mxu0 %v751
    %791 = vmatprep.subr.mxu0 0.0
    %792 = vmatpush1.msra.mxu0 0.0
    %793 = vmatprep.subr.mxu0 0.0
    %794 = vmatpush1.msra.mxu0 0.0
    %795 = vmatprep.subr.mxu0 0.0
    %796 = vmatpush1.msra.mxu0 0.0
    %797 = vmatprep.subr.mxu0 0.0
    %798 = vmatpush1.msra.mxu0 0.0
    %799 = vmatprep.subr.mxu0 0.0
    %800 = vmatpush1.msra.mxu0 0.0
    %801 = vmatprep.subr.mxu0 0.0
    %802 = vmatpush1.msra.mxu0 0.0
    %803 = vmatprep.subr.mxu0 0.0
    %804 = vmatpush1.msra.mxu0 0.0
    %805 = vmatprep.subr.mxu0 0.0
    %806 = vmatpush1.msra.mxu0 0.0
    %807 = vmatprep.subr.mxu0 0.0
    %808 = vmatpush1.msra.mxu0 0.0
    %809 = vmatprep.subr.mxu0 0.0
    %810 = vmatpush1.msra.mxu0 0.0
    %811 = vmatprep.subr.mxu0 0.0
    %812 = vmatpush1.msra.mxu0 0.0
    %813 = vmatprep.subr.mxu0 0.0
    %814 = vmatpush1.msra.mxu0 0.0
    %815 = vmatprep.subr.mxu0 0.0
    %816 = vmatpush1.msra.mxu0 0.0
    %817 = vmatprep.subr.mxu0 0.0
    %818 = vmatpush1.msra.mxu0 0.0
    %819 = vmatprep.subr.mxu0 0.0
    %820 = vmatpush1.msra.mxu0 0.0
    %821 = vmatprep.subr.mxu0 0.0
    %822 = vmatpush1.msra.mxu0 0.0
    %823 = vmatprep.mubr.f32.mxu0 0.0
    %824 = vmatmul.mubr.f32.gmra.mrb[0].mxu0 %v728
    %v825 = vpop.f32.mrb[0].mxu0
    %v826 = vadd.f32 %v757, %v825
    %v827 = vpop.f32.mrb[0].mxu0
    %828 = vmatprep.mubr.f32.mxu0 0.0
    %829 = vmatmul.mubr.f32.gmra.mrb[0].mxu0 %v729
    %v830 = vpop.f32.mrb[0].mxu0
    %v831 = vadd.f32 %v757, %v830
    %v832 = vpop.f32.mrb[0].mxu0
    %833 = vmatprep.mubr.f32.mxu0 0.0
    %834 = vmatmul.mubr.f32.gmra.mrb[0].mxu0 %v730
    %v835 = vpop.f32.mrb[0].mxu0
    %v836 = vadd.f32 %v757, %v835
    %v837 = vpop.f32.mrb[0].mxu0
    %838 = vmatprep.mubr.f32.mxu0 0.0
    %839 = vmatmul.mubr.f32.gmra.mrb[0].mxu0 %v731
    %v840 = vpop.f32.mrb[0].mxu0
    %v841 = vadd.f32 %v757, %v840
    %v842 = vpop.f32.mrb[0].mxu0
    %843 = vmatprep.mubr.f32.mxu0 0.0
    %844 = vmatmul.mubr.f32.gmra.mrb[0].mxu0 %v732
    %v845 = vpop.f32.mrb[0].mxu0
    %v846 = vadd.f32 %v757, %v845
    %v847 = vpop.f32.mrb[0].mxu0
    %848 = vmatprep.mubr.f32.mxu0 0.0
    %849 = vmatmul.mubr.f32.gmra.mrb[0].mxu0 %v733
    %v850 = vpop.f32.mrb[0].mxu0
    %v851 = vadd.f32 %v757, %v850
    %v852 = vpop.f32.mrb[0].mxu0
    %853 = vmatprep.mubr.f32.mxu0 0.0
    %854 = vmatmul.mubr.f32.gmra.mrb[0].mxu0 %v734
    %v855 = vpop.f32.mrb[0].mxu0
    %v856 = vadd.f32 %v757, %v855
    %v857 = vpop.f32.mrb[0].mxu0
    %858 = vmatprep.mubr.f32.mxu0 0.0
    %859 = vmatmul.mubr.f32.gmra.mrb[0].mxu0 %v735
    %v860 = vpop.f32.mrb[0].mxu0
    %v861 = vadd.f32 %v757, %v860
    %v862 = vpop.f32.mrb[0].mxu0
    %863 = vdwg.mxu0
    %v864 = vlaneseq
    %v865 = vand.u32 %v864, 127
    %vm866 = vcmp.lt.s32.totalorder %v865, 8
    %v867 = vsel %vm866, %v826, -1e+30
    %v868 = vsel %vm866, %v831, -1e+30
    %v869 = vsel %vm866, %v836, -1e+30
    %v870 = vsel %vm866, %v841, -1e+30
    %v871 = vsel %vm866, %v846, -1e+30
    %v872 = vsel %vm866, %v851, -1e+30
    %v873 = vsel %vm866, %v856, -1e+30
    %v874 = vsel %vm866, %v861, -1e+30
    %875 = vmax.xlane.f32.xlu0 %v867
    %v876 = vpop.xlane.xlu0 %875
    %877 = vmax.xlane.f32.xlu0 %v868
    %v878 = vpop.xlane.xlu0 %877
    %879 = vmax.xlane.f32.xlu0 %v869
    %v880 = vpop.xlane.xlu0 %879
    %881 = vmax.xlane.f32.xlu0 %v870
    %v882 = vpop.xlane.xlu0 %881
    %883 = vmax.xlane.f32.xlu0 %v871
    %v884 = vpop.xlane.xlu0 %883
    %885 = vmax.xlane.f32.xlu0 %v872
    %v886 = vpop.xlane.xlu0 %885
    %887 = vmax.xlane.f32.xlu0 %v873
    %v888 = vpop.xlane.xlu0 %887
    %889 = vmax.xlane.f32.xlu0 %v874
    %v890 = vpop.xlane.xlu0 %889
    %v891 = vsub.f32 %v867, %v876
    %v892 = vsub.f32 %v868, %v878
    %v893 = vsub.f32 %v869, %v880
    %v894 = vsub.f32 %v870, %v882
    %v895 = vsub.f32 %v871, %v884
    %v896 = vsub.f32 %v872, %v886
    %v897 = vsub.f32 %v873, %v888
    %v898 = vsub.f32 %v874, %v890
    %v899 = vmul.f32 %v891, 1.442695
    %v900 = vpow.pop %v899
    %v901 = vmul.f32 %v892, 1.442695
    %v902 = vpow.pop %v901
    %v903 = vmul.f32 %v893, 1.442695
    %v904 = vpow.pop %v903
    %v905 = vmul.f32 %v894, 1.442695
    %v906 = vpow.pop %v905
    %v907 = vmul.f32 %v895, 1.442695
    %v908 = vpow.pop %v907
    %v909 = vmul.f32 %v896, 1.442695
    %v910 = vpow.pop %v909
    %v911 = vmul.f32 %v897, 1.442695
    %v912 = vpow.pop %v911
    %v913 = vmul.f32 %v898, 1.442695
    %v914 = vpow.pop %v913
    %915 = vadd.xlane.f32.xlu0 %v900
    %v916 = vpop.xlane.xlu0 %915
    %917 = vadd.xlane.f32.xlu0 %v902
    %v918 = vpop.xlane.xlu0 %917
    %919 = vadd.xlane.f32.xlu0 %v904
    %v920 = vpop.xlane.xlu0 %919
    %921 = vadd.xlane.f32.xlu0 %v906
    %v922 = vpop.xlane.xlu0 %921
    %923 = vadd.xlane.f32.xlu0 %v908
    %v924 = vpop.xlane.xlu0 %923
    %925 = vadd.xlane.f32.xlu0 %v910
    %v926 = vpop.xlane.xlu0 %925
    %927 = vadd.xlane.f32.xlu0 %v912
    %v928 = vpop.xlane.xlu0 %927
    %929 = vadd.xlane.f32.xlu0 %v914
    %v930 = vpop.xlane.xlu0 %929
    %v931 = vlog2.pop %v916
    %v932 = vmul.f32 %v931, 0.6931472
    %v933 = vlog2.pop %v918
    %v934 = vmul.f32 %v933, 0.6931472
    %v935 = vlog2.pop %v920
    %v936 = vmul.f32 %v935, 0.6931472
    %v937 = vlog2.pop %v922
    %v938 = vmul.f32 %v937, 0.6931472
    %v939 = vlog2.pop %v924
    %v940 = vmul.f32 %v939, 0.6931472
    %v941 = vlog2.pop %v926
    %v942 = vmul.f32 %v941, 0.6931472
    %v943 = vlog2.pop %v928
    %v944 = vmul.f32 %v943, 0.6931472
    %v945 = vlog2.pop %v930
    %v946 = vmul.f32 %v945, 0.6931472
    %v947 = vsub.f32 %v891, %v932
    %v948 = vsub.f32 %v892, %v934
    %v949 = vsub.f32 %v893, %v936
    %v950 = vsub.f32 %v894, %v938
    %v951 = vsub.f32 %v895, %v940
    %v952 = vsub.f32 %v896, %v942
    %v953 = vsub.f32 %v897, %v944
    %v954 = vsub.f32 %v898, %v946
    %955 = vst [vmem:[#allocation12] sm:$0xff] %v947
    %956 = vst [vmem:[#allocation12 + $0x8] sm:$0xff] %v948
    %957 = vst [vmem:[#allocation12 + $0x10] sm:$0xff] %v949
    %958 = vst [vmem:[#allocation12 + $0x18] sm:$0xff] %v950
    %959 = vst [vmem:[#allocation12 + $0x20] sm:$0xff] %v951
    %960 = vst [vmem:[#allocation12 + $0x28] sm:$0xff] %v952
    %961 = vst [vmem:[#allocation12 + $0x30] sm:$0xff] %v953
    %962 = vst [vmem:[#allocation12 + $0x38] sm:$0xff] %v954
    // Predicated region
    $region54: #{tpu_custom_call.1} parent=1 // pred_check
      _
    $region55: #{tpu_custom_call.1} parent=1 // pred_check_branch
      %964 = sbr.rel (0) target = $region57
    $region56: #{tpu_custom_call.1} parent=1 // pred_region
      %s966 = ssub.s32 1024, 1024
      %967 = vsyncadd [#allocation5], %s966
      %s968 = sshll.u32 [#allocation12], 4
      %s969 = int_to_ptr.vmem [resolvable:$true] %s968
      %974 = dma.vmem_to_hbm [thread:$0]  %s969, 1024, %s8, [#allocation5], 128, 128, 8
    $region57: #{tpu_custom_call.1} parent=1 // pred_fallthru
      _
    // Predicated region
    $region58: #{tpu_custom_call.1} parent=1 // pred_check
      _
    $region59: #{tpu_custom_call.1} parent=1 // pred_check_branch
      %976 = sbr.rel (0) target = $region61
    $region60: #{tpu_custom_call.1} parent=1 // pred_region
      %977 = dma.done [#allocation5], 1024
    $region61: #{tpu_custom_call.1} parent=1 // pred_fallthru
      _
    %978 = vsyncpa [#allocation4], 1
    %979 = vsyncpa [#allocation7], 1
    %980 = vsyncpa [#allocation10], 1
    %981 = vsyncpa [#allocation5], 1

</llo_original>
